<compile_context>
chip_gen: v7x
topology: tpu7x:2x2x1
jax: 0.10.0
libtpu: 0.0.40
codegen_flags: <defaults>
</compile_context>

<pallas_src>
import functools

import jax
import jax.numpy as jnp
from jax.experimental import pallas as pl
from jax.experimental.pallas import tpu as pltpu

HIDDEN = 64          # fc1/fc2 width from the PyTorch module
LANE = 128           # TPU lane width — pad hidden/action feature axes to this
SUBLANE = 8
TB_MAX = 1024        # max batch tile (rows)


def _round_up(n, m):
    return ((n + m - 1) // m) * m


def _pad2(a, rows, cols, dtype):
    """Zero-pad a 2-D array up to (rows, cols) and cast."""
    return jnp.pad(a, ((0, rows - a.shape[0]), (0, cols - a.shape[1]))).astype(dtype)


def dqn_kernel(x_ref, w1_ref, b1_ref, w2_ref, b2_ref, w3_ref, b3_ref, o_ref):
    """Fused 3-layer MLP on one (TB, state_size) batch tile."""
    x = x_ref[...]                                   # (TB, S) f32, unpadded
    S = x.shape[1]

    # fc1: K = state_size is tiny, so do it as S rank-1 broadcast-FMAs on the
    # VPU (full f32 precision on the observations, no lane padding of x).
    h1 = b1_ref[...] + x[:, 0:1] * w1_ref[0:1, :]
    for k in range(1, S):                            # static unroll, S is small
        h1 = h1 + x[:, k:k + 1] * w1_ref[k:k + 1, :]
    h1 = jnp.maximum(h1, 0.0).astype(jnp.bfloat16)   # (TB, H_PAD)

    # fc2 / fc3: bf16 MXU matmuls with f32 accumulation.
    h2 = jnp.dot(h1, w2_ref[...], preferred_element_type=jnp.float32) + b2_ref[...]
    h2 = jnp.maximum(h2, 0.0).astype(jnp.bfloat16)   # (TB, H_PAD)

    q = jnp.dot(h2, w3_ref[...], preferred_element_type=jnp.float32) + b3_ref[...]
    o_ref[...] = q[:, : o_ref.shape[-1]]             # narrow (TB, action_size) f32 store


def prepare_params(params):
    """Pad/cast the weights ONCE (outside the per-call forward path).

    w1/b1 stay f32 (fc1 runs in f32 on the VPU); w2/w3 are bf16 for the MXU;
    biases stay f32 for the f32 accumulator add.  Zero padding is exact.
    Re-run after every optimizer step that updates the raw params.
    """
    state_size, hidden = params["w1"].shape
    action_size = params["w3"].shape[1]
    h_pad = _round_up(hidden, LANE)
    a_pad = _round_up(action_size, LANE)
    return {
        "w1": _pad2(params["w1"], state_size, h_pad, jnp.float32),
        "b1": _pad2(params["b1"].reshape(1, -1), 1, h_pad, jnp.float32),
        "w2": _pad2(params["w2"], h_pad, h_pad, jnp.bfloat16),
        "b2": _pad2(params["b2"].reshape(1, -1), 1, h_pad, jnp.float32),
        "w3": _pad2(params["w3"], h_pad, a_pad, jnp.bfloat16),
        "b3": _pad2(params["b3"].reshape(1, -1), 1, a_pad, jnp.float32),
    }


@functools.partial(jax.jit, static_argnames=("action_size", "tb_max"))
def dqn_forward(x, prepared, *, action_size, tb_max=TB_MAX):
    """x: [B, state_size] float32 (unpadded). prepared: output of prepare_params."""
    B, state_size = x.shape
    h_pad = prepared["w2"].shape[0]
    a_pad = prepared["w3"].shape[1]

    # Batch tile: multiple of 8, capped at tb_max, split so the grid has >= 2
    # steps when the batch allows it (2-TC sharding on v7x).  Last block may be
    # ragged; Pallas masks OOB reads/writes, so no batch padding / extra copy.
    B8 = _round_up(B, SUBLANE)
    TB = max(SUBLANE, min(tb_max, _round_up(pl.cdiv(B8, 2), SUBLANE)))
    grid = (pl.cdiv(B, TB),)

    batch_spec = lambda feat: pl.BlockSpec((TB, feat), lambda i: (i, 0))
    # Constant index_map -> weights/biases resident in VMEM across grid steps.
    const_spec = lambda shape: pl.BlockSpec(shape, lambda i: (0, 0))

    out = pl.pallas_call(
        dqn_kernel,
        out_shape=jax.ShapeDtypeStruct((B, action_size), jnp.float32),
        grid=grid,
        in_specs=[
            batch_spec(state_size),              # x tile follows the batch grid (unpadded)
            const_spec((state_size, h_pad)),     # w1 (f32)
            const_spec((1, h_pad)),              # b1
            const_spec((h_pad, h_pad)),          # w2 (bf16)
            const_spec((1, h_pad)),              # b2
            const_spec((h_pad, a_pad)),          # w3 (bf16)
            const_spec((1, a_pad)),              # b3
        ],
        out_specs=pl.BlockSpec((TB, action_size), lambda i: (i, 0)),
        compiler_params=pltpu.CompilerParams(
            dimension_semantics=("parallel",),   # 2-TC sharding on v7x; harmless elsewhere
        ),
    )(x, prepared["w1"], prepared["b1"], prepared["w2"], prepared["b2"],
      prepared["w3"], prepared["b3"])
    return out


def init_dqn_params(key, state_size, action_size, hidden=HIDDEN):
    """Deterministic synthetic init (uniform fan-in, like PyTorch's default Linear init)."""
    ks = jax.random.split(key, 6)

    def linear(kw, kb, fan_in, fan_out):
        bound = 1.0 / jnp.sqrt(float(fan_in))
        w = jax.random.uniform(kw, (fan_in, fan_out), jnp.float32, -bound, bound)
        b = jax.random.uniform(kb, (1, fan_out), jnp.float32, -bound, bound)
        return w, b

    w1, b1 = linear(ks[0], ks[1], state_size, hidden)
    w2, b2 = linear(ks[2], ks[3], hidden, hidden)
    w3, b3 = linear(ks[4], ks[5], hidden, action_size)
    return {"w1": w1, "b1": b1, "w2": w2, "b2": b2, "w3": w3, "b3": b3}


def dqn_reference(x, p):
    h1 = jnp.maximum(x @ p["w1"] + p["b1"], 0.0)
    h2 = jnp.maximum(h1 @ p["w2"] + p["b2"], 0.0)
    return h2 @ p["w3"] + p["b3"]


if __name__ == "__main__":
    key = jax.random.PRNGKey(0)
    k_x, k_p = jax.random.split(key)

    batch, state_size, action_size = 2, 8, 4
    x = jax.random.normal(k_x, (batch, state_size), jnp.float32)
    params = init_dqn_params(k_p, state_size, action_size)

    prepared = prepare_params(params)        # hoisted: once per weight update, not per forward
    out = dqn_forward(x, prepared, action_size=action_size)
    out = jax.block_until_ready(out)

    ref = dqn_reference(x, params)
    assert out.shape == (batch, action_size)
    # bf16 hidden-layer weights/activations with f32 accumulation -> loose tolerance
    # vs the pure f32 reference (input x and fc1 stay f32).
    assert jnp.allclose(out, ref, atol=3e-2, rtol=3e-2), (out, ref)

    print("KERNEL_OK")
</pallas_src>

<mosaic_0001>
module attributes {stable_mosaic.version = 11 : i64} {
  func.func @dqn_kernel(%arg0: i32, %arg1: memref<8x8xf32, #tpu.memory_space<vmem>>, %arg2: memref<8x128xf32, #tpu.memory_space<vmem>>, %arg3: memref<1x128xf32, #tpu.memory_space<vmem>>, %arg4: memref<128x128xbf16, #tpu.memory_space<vmem>>, %arg5: memref<1x128xf32, #tpu.memory_space<vmem>>, %arg6: memref<128x128xbf16, #tpu.memory_space<vmem>>, %arg7: memref<1x128xf32, #tpu.memory_space<vmem>>, %arg8: memref<8x4xf32, #tpu.memory_space<vmem>>) attributes {dimension_semantics = [#tpu.dimension_semantics<parallel>], iteration_bounds = array<i64: 1>, scalar_prefetch = 0 : i64, scratch_operands = 0 : i64, tpu.core_type = #tpu.core_type<tc>, window_params = [{transform_indices = @transform_0, window_bounds = array<i64: 8, 8>}, {pipeline_mode = #tpu.pipeline_mode<synchronous>, transform_indices = @transform_1, window_bounds = array<i64: 8, 128>}, {pipeline_mode = #tpu.pipeline_mode<synchronous>, transform_indices = @transform_2, window_bounds = array<i64: 1, 128>}, {pipeline_mode = #tpu.pipeline_mode<synchronous>, transform_indices = @transform_3, window_bounds = array<i64: 128, 128>}, {pipeline_mode = #tpu.pipeline_mode<synchronous>, transform_indices = @transform_4, window_bounds = array<i64: 1, 128>}, {pipeline_mode = #tpu.pipeline_mode<synchronous>, transform_indices = @transform_5, window_bounds = array<i64: 128, 128>}, {pipeline_mode = #tpu.pipeline_mode<synchronous>, transform_indices = @transform_6, window_bounds = array<i64: 1, 128>}, {transform_indices = @transform_7, window_bounds = array<i64: 8, 4>}]} {
    %c0 = arith.constant 0 : index
    %c0_0 = arith.constant 0 : index
    %0 = vector.load %arg1[%c0, %c0_0] : memref<8x8xf32, #tpu.memory_space<vmem>>, vector<8x8xf32>
    %c0_1 = arith.constant 0 : index
    %c0_2 = arith.constant 0 : index
    %1 = vector.load %arg3[%c0_1, %c0_2] : memref<1x128xf32, #tpu.memory_space<vmem>>, vector<1x128xf32>
    %2 = vector.extract_strided_slice %0 {offsets = [0, 0], sizes = [8, 1], strides = [1, 1]} : vector<8x8xf32> to vector<8x1xf32>
    %c0_3 = arith.constant 0 : index
    %c0_4 = arith.constant 0 : index
    %3 = vector.load %arg2[%c0_3, %c0_4] : memref<8x128xf32, #tpu.memory_space<vmem>>, vector<1x128xf32>
    %4 = vector.broadcast %2 : vector<8x1xf32> to vector<8x128xf32>
    %5 = vector.broadcast %3 : vector<1x128xf32> to vector<8x128xf32>
    %6 = arith.mulf %4, %5 : vector<8x128xf32>
    %7 = vector.broadcast %1 : vector<1x128xf32> to vector<8x128xf32>
    %8 = arith.addf %7, %6 : vector<8x128xf32>
    %9 = vector.extract_strided_slice %0 {offsets = [0, 1], sizes = [8, 1], strides = [1, 1]} : vector<8x8xf32> to vector<8x1xf32>
    %c1 = arith.constant 1 : index
    %c0_5 = arith.constant 0 : index
    %10 = vector.load %arg2[%c1, %c0_5] : memref<8x128xf32, #tpu.memory_space<vmem>>, vector<1x128xf32>
    %11 = vector.broadcast %9 : vector<8x1xf32> to vector<8x128xf32>
    %12 = vector.broadcast %10 : vector<1x128xf32> to vector<8x128xf32>
    %13 = arith.mulf %11, %12 : vector<8x128xf32>
    %14 = arith.addf %8, %13 : vector<8x128xf32>
    %15 = vector.extract_strided_slice %0 {offsets = [0, 2], sizes = [8, 1], strides = [1, 1]} : vector<8x8xf32> to vector<8x1xf32>
    %c2 = arith.constant 2 : index
    %c0_6 = arith.constant 0 : index
    %16 = vector.load %arg2[%c2, %c0_6] : memref<8x128xf32, #tpu.memory_space<vmem>>, vector<1x128xf32>
    %17 = vector.broadcast %15 : vector<8x1xf32> to vector<8x128xf32>
    %18 = vector.broadcast %16 : vector<1x128xf32> to vector<8x128xf32>
    %19 = arith.mulf %17, %18 : vector<8x128xf32>
    %20 = arith.addf %14, %19 : vector<8x128xf32>
    %21 = vector.extract_strided_slice %0 {offsets = [0, 3], sizes = [8, 1], strides = [1, 1]} : vector<8x8xf32> to vector<8x1xf32>
    %c3 = arith.constant 3 : index
    %c0_7 = arith.constant 0 : index
    %22 = vector.load %arg2[%c3, %c0_7] : memref<8x128xf32, #tpu.memory_space<vmem>>, vector<1x128xf32>
    %23 = vector.broadcast %21 : vector<8x1xf32> to vector<8x128xf32>
    %24 = vector.broadcast %22 : vector<1x128xf32> to vector<8x128xf32>
    %25 = arith.mulf %23, %24 : vector<8x128xf32>
    %26 = arith.addf %20, %25 : vector<8x128xf32>
    %27 = vector.extract_strided_slice %0 {offsets = [0, 4], sizes = [8, 1], strides = [1, 1]} : vector<8x8xf32> to vector<8x1xf32>
    %c4 = arith.constant 4 : index
    %c0_8 = arith.constant 0 : index
    %28 = vector.load %arg2[%c4, %c0_8] : memref<8x128xf32, #tpu.memory_space<vmem>>, vector<1x128xf32>
    %29 = vector.broadcast %27 : vector<8x1xf32> to vector<8x128xf32>
    %30 = vector.broadcast %28 : vector<1x128xf32> to vector<8x128xf32>
    %31 = arith.mulf %29, %30 : vector<8x128xf32>
    %32 = arith.addf %26, %31 : vector<8x128xf32>
    %33 = vector.extract_strided_slice %0 {offsets = [0, 5], sizes = [8, 1], strides = [1, 1]} : vector<8x8xf32> to vector<8x1xf32>
    %c5 = arith.constant 5 : index
    %c0_9 = arith.constant 0 : index
    %34 = vector.load %arg2[%c5, %c0_9] : memref<8x128xf32, #tpu.memory_space<vmem>>, vector<1x128xf32>
    %35 = vector.broadcast %33 : vector<8x1xf32> to vector<8x128xf32>
    %36 = vector.broadcast %34 : vector<1x128xf32> to vector<8x128xf32>
    %37 = arith.mulf %35, %36 : vector<8x128xf32>
    %38 = arith.addf %32, %37 : vector<8x128xf32>
    %39 = vector.extract_strided_slice %0 {offsets = [0, 6], sizes = [8, 1], strides = [1, 1]} : vector<8x8xf32> to vector<8x1xf32>
    %c6 = arith.constant 6 : index
    %c0_10 = arith.constant 0 : index
    %40 = vector.load %arg2[%c6, %c0_10] : memref<8x128xf32, #tpu.memory_space<vmem>>, vector<1x128xf32>
    %41 = vector.broadcast %39 : vector<8x1xf32> to vector<8x128xf32>
    %42 = vector.broadcast %40 : vector<1x128xf32> to vector<8x128xf32>
    %43 = arith.mulf %41, %42 : vector<8x128xf32>
    %44 = arith.addf %38, %43 : vector<8x128xf32>
    %45 = vector.extract_strided_slice %0 {offsets = [0, 7], sizes = [8, 1], strides = [1, 1]} : vector<8x8xf32> to vector<8x1xf32>
    %c7 = arith.constant 7 : index
    %c0_11 = arith.constant 0 : index
    %46 = vector.load %arg2[%c7, %c0_11] : memref<8x128xf32, #tpu.memory_space<vmem>>, vector<1x128xf32>
    %47 = vector.broadcast %45 : vector<8x1xf32> to vector<8x128xf32>
    %48 = vector.broadcast %46 : vector<1x128xf32> to vector<8x128xf32>
    %49 = arith.mulf %47, %48 : vector<8x128xf32>
    %50 = arith.addf %44, %49 : vector<8x128xf32>
    %cst = arith.constant 0.000000e+00 : f32
    %51 = vector.broadcast %cst : f32 to vector<8x128xf32>
    %52 = arith.maximumf %50, %51 : vector<8x128xf32>
    %53 = arith.truncf %52 : vector<8x128xf32> to vector<8x128xbf16>
    %c0_12 = arith.constant 0 : index
    %c0_13 = arith.constant 0 : index
    %54 = vector.load %arg4[%c0_12, %c0_13] : memref<128x128xbf16, #tpu.memory_space<vmem>>, vector<128x128xbf16>
    %cst_14 = arith.constant dense<0.000000e+00> : vector<8x128xf32>
    %55 = tpu.matmul %53, %54, %cst_14 {dimension_numbers = #tpu.dot_dimension_numbers<[1], [0], [0], [1], [0, 0, 1, 1], [], []>} : vector<8x128xbf16>, vector<128x128xbf16>, vector<8x128xf32> -> vector<8x128xf32>
    %c0_15 = arith.constant 0 : index
    %c0_16 = arith.constant 0 : index
    %56 = vector.load %arg5[%c0_15, %c0_16] : memref<1x128xf32, #tpu.memory_space<vmem>>, vector<1x128xf32>
    %57 = vector.broadcast %56 : vector<1x128xf32> to vector<8x128xf32>
    %58 = arith.addf %55, %57 : vector<8x128xf32>
    %cst_17 = arith.constant 0.000000e+00 : f32
    %59 = vector.broadcast %cst_17 : f32 to vector<8x128xf32>
    %60 = arith.maximumf %58, %59 : vector<8x128xf32>
    %61 = arith.truncf %60 : vector<8x128xf32> to vector<8x128xbf16>
    %c0_18 = arith.constant 0 : index
    %c0_19 = arith.constant 0 : index
    %62 = vector.load %arg6[%c0_18, %c0_19] : memref<128x128xbf16, #tpu.memory_space<vmem>>, vector<128x128xbf16>
    %cst_20 = arith.constant dense<0.000000e+00> : vector<8x128xf32>
    %63 = tpu.matmul %61, %62, %cst_20 {dimension_numbers = #tpu.dot_dimension_numbers<[1], [0], [0], [1], [0, 0, 1, 1], [], []>} : vector<8x128xbf16>, vector<128x128xbf16>, vector<8x128xf32> -> vector<8x128xf32>
    %c0_21 = arith.constant 0 : index
    %c0_22 = arith.constant 0 : index
    %64 = vector.load %arg7[%c0_21, %c0_22] : memref<1x128xf32, #tpu.memory_space<vmem>>, vector<1x128xf32>
    %65 = vector.broadcast %64 : vector<1x128xf32> to vector<8x128xf32>
    %66 = arith.addf %63, %65 : vector<8x128xf32>
    %67 = vector.extract_strided_slice %66 {offsets = [0, 0], sizes = [8, 4], strides = [1, 1]} : vector<8x128xf32> to vector<8x4xf32>
    %c0_23 = arith.constant 0 : index
    %c0_24 = arith.constant 0 : index
    %68 = vector.load %arg8[%c0_23, %c0_24] : memref<8x4xf32, #tpu.memory_space<vmem>>, vector<8x4xf32>
    tpu.vector_store %arg8[%c0_23, %c0_24], %67 {strides = array<i32>} : memref<8x4xf32, #tpu.memory_space<vmem>>, vector<8x4xf32>,
    return
  }
  func.func @transform_0(%arg0: i32) -> (i32, i32) {
    %c0_i32 = arith.constant 0 : i32
    %c0_i32_0 = arith.constant 0 : i32
    return %arg0, %c0_i32 : i32, i32
  }
  func.func @transform_1(%arg0: i32) -> (i32, i32) {
    %c0_i32 = arith.constant 0 : i32
    %c0_i32_0 = arith.constant 0 : i32
    %c0_i32_1 = arith.constant 0 : i32
    return %c0_i32, %c0_i32_0 : i32, i32
  }
  func.func @transform_2(%arg0: i32) -> (i32, i32) {
    %c0_i32 = arith.constant 0 : i32
    %c0_i32_0 = arith.constant 0 : i32
    %c0_i32_1 = arith.constant 0 : i32
    return %c0_i32, %c0_i32_0 : i32, i32
  }
  func.func @transform_3(%arg0: i32) -> (i32, i32) {
    %c0_i32 = arith.constant 0 : i32
    %c0_i32_0 = arith.constant 0 : i32
    %c0_i32_1 = arith.constant 0 : i32
    return %c0_i32, %c0_i32_0 : i32, i32
  }
  func.func @transform_4(%arg0: i32) -> (i32, i32) {
    %c0_i32 = arith.constant 0 : i32
    %c0_i32_0 = arith.constant 0 : i32
    %c0_i32_1 = arith.constant 0 : i32
    return %c0_i32, %c0_i32_0 : i32, i32
  }
  func.func @transform_5(%arg0: i32) -> (i32, i32) {
    %c0_i32 = arith.constant 0 : i32
    %c0_i32_0 = arith.constant 0 : i32
    %c0_i32_1 = arith.constant 0 : i32
    return %c0_i32, %c0_i32_0 : i32, i32
  }
  func.func @transform_6(%arg0: i32) -> (i32, i32) {
    %c0_i32 = arith.constant 0 : i32
    %c0_i32_0 = arith.constant 0 : i32
    %c0_i32_1 = arith.constant 0 : i32
    return %c0_i32, %c0_i32_0 : i32, i32
  }
  func.func @transform_7(%arg0: i32) -> (i32, i32) {
    %c0_i32 = arith.constant 0 : i32
    %c0_i32_0 = arith.constant 0 : i32
    return %arg0, %c0_i32 : i32, i32
  }
}

</mosaic_0001>

<llo_original>
// kernel: dqn_forward.1
$region0: #{dqn_forward.1}
  #allocation0 [shape = 'u32[]', space=smem, size = 0x4, offset = 0x4, fixed_abs, tag = 'smem constant byte address 0x4 - core index']
  #allocation1 [shape = 'u32[144,128]{1,0:T(1,128)}', space=vmem, size = 0x12000, scoped, tag = 'internal scratch']
  %s0 = inlined_call_operand.hbm [shape: f32[2,8], index: 0, kind: input, shape index: {}]
  %s1 = inlined_call_operand.vmem [shape: f32[8,128], index: 1, kind: input, shape index: {}]
  %s2 = inlined_call_operand.vmem [shape: f32[1,128], index: 2, kind: input, shape index: {}]
  %s3 = inlined_call_operand.hbm [shape: bf16[128,128], index: 3, kind: input, shape index: {}]
  %s4 = inlined_call_operand.vmem [shape: f32[1,128], index: 4, kind: input, shape index: {}]
  %s5 = inlined_call_operand.hbm [shape: bf16[128,128], index: 5, kind: input, shape index: {}]
  %s6 = inlined_call_operand.vmem [shape: f32[1,128], index: 6, kind: input, shape index: {}]
  %s7 = inlined_call_operand.hbm [shape: f32[2,4], index: 7, kind: output, shape index: {}]
  %s8 = sld [smem:[#allocation0]]
  $region50: #{dqn_forward.1} parent=0
    _
  %s10 = ssub.s32 1, %s8
  %s11 = scalar_select 0, %s10, %s8
  $region1: #{dqn_forward.1} parent=0
    #allocation2 [shape = 'u8[4096]{0}', space=vmem, size = 0x1000, scoped, tag = 'input window, operand 0, single buffered']
    #allocation3 [shape = 's32[1]{0}', space=sflag, size = 0x4, scoped, tag = 'scoped memory for dqn_forward.1']
    #allocation4 [shape = 's32[1]{0}', space=sflag, size = 0x4, scoped, tag = 'scoped memory for dqn_forward.1']
    #allocation5 [shape = 'u8[32768]{0}', space=vmem, size = 0x8000, scoped, tag = 'input window, operand 3, single buffered']
    #allocation6 [shape = 's32[1]{0}', space=sflag, size = 0x4, scoped, tag = 'scoped memory for dqn_forward.1']
    #allocation7 [shape = 'u8[32768]{0}', space=vmem, size = 0x8000, scoped, tag = 'input window, operand 5, single buffered']
    #allocation8 [shape = 'u8[4096]{0}', space=vmem, size = 0x1000, scoped, tag = 'output window, operand 0, single buffered']
    %12 = vsyncpa [#allocation3], 0
    %13 = vsyncpa [#allocation6], 0
    %14 = vsyncpa [#allocation4], 0
    // Predicated region
    $region2: #{dqn_forward.1} parent=1 // pred_check
      _
    $region3: #{dqn_forward.1} parent=1 // pred_check_branch
      %16 = sbr.rel (0) target = $region5
    $region4: #{dqn_forward.1} parent=1 // pred_region
      %s18 = ssub.s32 128, 32
      %19 = vsyncadd [#allocation3], %s18
      %s20 = sshll.u32 [#allocation2], 4
      %s21 = int_to_ptr.vmem [resolvable:$true] %s20
      %26 = dma.hbm_to_vmem [thread:$0]  %s0, 32, %s21, [#allocation3], 32, 32, 2
    $region5: #{dqn_forward.1} parent=1 // pred_fallthru
      _
    // Predicated region
    $region6: #{dqn_forward.1} parent=1 // pred_check
      _
    $region7: #{dqn_forward.1} parent=1 // pred_check_branch
      %28 = sbr.rel (0) target = $region9
    $region8: #{dqn_forward.1} parent=1 // pred_region
      _
    $region9: #{dqn_forward.1} parent=1 // pred_fallthru
      _
    // Predicated region
    $region10: #{dqn_forward.1} parent=1 // pred_check
      _
    $region11: #{dqn_forward.1} parent=1 // pred_check_branch
      %30 = sbr.rel (0) target = $region13
    $region12: #{dqn_forward.1} parent=1 // pred_region
      _
    $region13: #{dqn_forward.1} parent=1 // pred_fallthru
      _
    // Predicated region
    $region14: #{dqn_forward.1} parent=1 // pred_check
      _
    $region15: #{dqn_forward.1} parent=1 // pred_check_branch
      %32 = sbr.rel (0) target = $region17
    $region16: #{dqn_forward.1} parent=1 // pred_region
      %s34 = ssub.s32 1024, 1024
      %35 = vsyncadd [#allocation6], %s34
      %s36 = sshll.u32 [#allocation5], 4
      %s37 = int_to_ptr.vmem [resolvable:$true] %s36
      %42 = dma.hbm_to_vmem [thread:$0]  %s3, 1024, %s37, [#allocation6], 64, 64, 4
    $region17: #{dqn_forward.1} parent=1 // pred_fallthru
      _
    // Predicated region
    $region18: #{dqn_forward.1} parent=1 // pred_check
      _
    $region19: #{dqn_forward.1} parent=1 // pred_check_branch
      %44 = sbr.rel (0) target = $region21
    $region20: #{dqn_forward.1} parent=1 // pred_region
      _
    $region21: #{dqn_forward.1} parent=1 // pred_fallthru
      _
    // Predicated region
    $region22: #{dqn_forward.1} parent=1 // pred_check
      _
    $region23: #{dqn_forward.1} parent=1 // pred_check_branch
      %46 = sbr.rel (0) target = $region25
    $region24: #{dqn_forward.1} parent=1 // pred_region
      %s48 = ssub.s32 1024, 1024
      %49 = vsyncadd [#allocation6], %s48
      %s50 = sshll.u32 [#allocation7], 4
      %s51 = int_to_ptr.vmem [resolvable:$true] %s50
      %56 = dma.hbm_to_vmem [thread:$0]  %s5, 1024, %s51, [#allocation6], 64, 64, 4
    $region25: #{dqn_forward.1} parent=1 // pred_fallthru
      _
    // Predicated region
    $region26: #{dqn_forward.1} parent=1 // pred_check
      _
    $region27: #{dqn_forward.1} parent=1 // pred_check_branch
      %58 = sbr.rel (0) target = $region29
    $region28: #{dqn_forward.1} parent=1 // pred_region
      _
    $region29: #{dqn_forward.1} parent=1 // pred_fallthru
      _
    // Predicated region
    $region30: #{dqn_forward.1} parent=1 // pred_check
      _
    $region31: #{dqn_forward.1} parent=1 // pred_check_branch
      %60 = sbr.rel (0) target = $region33
    $region32: #{dqn_forward.1} parent=1 // pred_region
      %61 = dma.done [#allocation3], 128
    $region33: #{dqn_forward.1} parent=1 // pred_fallthru
      _
    // Predicated region
    $region34: #{dqn_forward.1} parent=1 // pred_check
      _
    $region35: #{dqn_forward.1} parent=1 // pred_check_branch
      %63 = sbr.rel (0) target = $region37
    $region36: #{dqn_forward.1} parent=1 // pred_region
      %64 = dma.done [#allocation6], 1024
    $region37: #{dqn_forward.1} parent=1 // pred_fallthru
      _
    // Predicated region
    $region38: #{dqn_forward.1} parent=1 // pred_check
      _
    $region39: #{dqn_forward.1} parent=1 // pred_check_branch
      %66 = sbr.rel (0) target = $region41
    $region40: #{dqn_forward.1} parent=1 // pred_region
      %67 = dma.done [#allocation6], 1024
    $region41: #{dqn_forward.1} parent=1 // pred_fallthru
      _
    %v69 = vld [vmem:[#allocation2] sm:$0xff]
    %v70 = vld [vmem:[%s2] sm:$0x1]
    %v71 = vld [vmem:[%s1] sm:$0x1]
    %73 = vset.pattern.permute.xlu0 0
    %74 = vperm.xlu0 %73, %v69
    %v75 = vpop.permute.xlu0 %74
    %v77 = vlaneseq
    %v78 = vshrl.u32 %v77, 7
    %v79 = vsub.s32 0, %v78
    %v80 = vrot.slane %v71, %v79
    %v81 = vmul.f32 %v75, %v80
    %v83 = vlaneseq
    %v84 = vshrl.u32 %v83, 7
    %v85 = vsub.s32 0, %v84
    %v86 = vrot.slane %v70, %v85
    %v88 = vadd.f32 %v86, %v81
    %v89 = vld [vmem:[%s1 + $0x1] sm:$0x1]
    %90 = vset.pattern.permute.xlu0 1
    %91 = vperm.xlu0 %90, %v69
    %v92 = vpop.permute.xlu0 %91
    %v94 = vlaneseq
    %v95 = vshrl.u32 %v94, 7
    %v96 = vsub.s32 0, %v95
    %v97 = vrot.slane %v89, %v96
    %v98 = vmul.f32 %v92, %v97
    %v99 = vadd.f32 %v88, %v98
    %v100 = vld [vmem:[%s1 + $0x2] sm:$0x1]
    %101 = vset.pattern.permute.xlu0 2
    %102 = vperm.xlu0 %101, %v69
    %v103 = vpop.permute.xlu0 %102
    %v105 = vlaneseq
    %v106 = vshrl.u32 %v105, 7
    %v107 = vsub.s32 0, %v106
    %v108 = vrot.slane %v100, %v107
    %v109 = vmul.f32 %v103, %v108
    %v110 = vadd.f32 %v99, %v109
    %v111 = vld [vmem:[%s1 + $0x3] sm:$0x1]
    %112 = vset.pattern.permute.xlu0 3
    %113 = vperm.xlu0 %112, %v69
    %v114 = vpop.permute.xlu0 %113
    %v116 = vlaneseq
    %v117 = vshrl.u32 %v116, 7
    %v118 = vsub.s32 0, %v117
    %v119 = vrot.slane %v111, %v118
    %v120 = vmul.f32 %v114, %v119
    %v121 = vadd.f32 %v110, %v120
    %v122 = vld [vmem:[%s1 + $0x4] sm:$0x1]
    %123 = vset.pattern.permute.xlu0 4
    %124 = vperm.xlu0 %123, %v69
    %v125 = vpop.permute.xlu0 %124
    %v127 = vlaneseq
    %v128 = vshrl.u32 %v127, 7
    %v129 = vsub.s32 0, %v128
    %v130 = vrot.slane %v122, %v129
    %v131 = vmul.f32 %v125, %v130
    %v132 = vadd.f32 %v121, %v131
    %v133 = vld [vmem:[%s1 + $0x5] sm:$0x1]
    %134 = vset.pattern.permute.xlu0 5
    %135 = vperm.xlu0 %134, %v69
    %v136 = vpop.permute.xlu0 %135
    %v138 = vlaneseq
    %v139 = vshrl.u32 %v138, 7
    %v140 = vsub.s32 0, %v139
    %v141 = vrot.slane %v133, %v140
    %v142 = vmul.f32 %v136, %v141
    %v143 = vadd.f32 %v132, %v142
    %v144 = vld [vmem:[%s1 + $0x6] sm:$0x1]
    %145 = vset.pattern.permute.xlu0 6
    %146 = vperm.xlu0 %145, %v69
    %v147 = vpop.permute.xlu0 %146
    %v149 = vlaneseq
    %v150 = vshrl.u32 %v149, 7
    %v151 = vsub.s32 0, %v150
    %v152 = vrot.slane %v144, %v151
    %v153 = vmul.f32 %v147, %v152
    %v154 = vadd.f32 %v143, %v153
    %v155 = vld [vmem:[%s1 + $0x7] sm:$0x1]
    %156 = vset.pattern.permute.xlu0 7
    %157 = vperm.xlu0 %156, %v69
    %v158 = vpop.permute.xlu0 %157
    %v160 = vlaneseq
    %v161 = vshrl.u32 %v160, 7
    %v162 = vsub.s32 0, %v161
    %v163 = vrot.slane %v155, %v162
    %v164 = vmul.f32 %v158, %v163
    %v165 = vadd.f32 %v154, %v164
    %v166 = vmax.f32 %v165, 0.0
    %v167 = vpack.c.bf16 %v166, %v166
    %v168 = vld [vmem:[#allocation5] sm:$0xf]
    %v169 = vld [vmem:[#allocation5 + $0x4] sm:$0xf]
    %v170 = vld [vmem:[#allocation5 + $0x8] sm:$0xf]
    %v171 = vld [vmem:[#allocation5 + $0xc] sm:$0xf]
    %v172 = vld [vmem:[#allocation5 + $0x10] sm:$0xf]
    %v173 = vld [vmem:[#allocation5 + $0x14] sm:$0xf]
    %v174 = vld [vmem:[#allocation5 + $0x18] sm:$0xf]
    %v175 = vld [vmem:[#allocation5 + $0x1c] sm:$0xf]
    %v176 = vld [vmem:[#allocation5 + $0x20] sm:$0xf]
    %v177 = vld [vmem:[#allocation5 + $0x24] sm:$0xf]
    %v178 = vld [vmem:[#allocation5 + $0x28] sm:$0xf]
    %v179 = vld [vmem:[#allocation5 + $0x2c] sm:$0xf]
    %v180 = vld [vmem:[#allocation5 + $0x30] sm:$0xf]
    %v181 = vld [vmem:[#allocation5 + $0x34] sm:$0xf]
    %v182 = vld [vmem:[#allocation5 + $0x38] sm:$0xf]
    %v183 = vld [vmem:[#allocation5 + $0x3c] sm:$0xf]
    %v184 = vld [vmem:[%s4] sm:$0x1]
    %v186 = vlaneseq
    %v187 = vshrl.u32 %v186, 7
    %v188 = vsub.s32 0, %v187
    %v189 = vrot.slane %v184, %v188
    %v207 = vunpack.c.l.b16 %v168
    %v208 = vunpack.c.l.b16 %v169
    %v209 = vunpack.c.l.b16 %v170
    %v210 = vunpack.c.l.b16 %v171
    %v211 = vunpack.c.l.b16 %v172
    %v212 = vunpack.c.l.b16 %v173
    %v213 = vunpack.c.l.b16 %v174
    %v214 = vunpack.c.l.b16 %v175
    %v215 = vunpack.c.l.b16 %v176
    %v216 = vunpack.c.l.b16 %v177
    %v217 = vunpack.c.l.b16 %v178
    %v218 = vunpack.c.l.b16 %v179
    %v219 = vunpack.c.l.b16 %v180
    %v220 = vunpack.c.l.b16 %v181
    %v221 = vunpack.c.l.b16 %v182
    %v222 = vunpack.c.l.b16 %v183
    %v223 = vpack.c.b16 %v208, %v207
    %v224 = vpack.c.b16 %v210, %v209
    %v225 = vpack.c.b16 %v212, %v211
    %v226 = vpack.c.b16 %v214, %v213
    %v227 = vpack.c.b16 %v216, %v215
    %v228 = vpack.c.b16 %v218, %v217
    %v229 = vpack.c.b16 %v220, %v219
    %v230 = vpack.c.b16 %v222, %v221
    %239 = vmatprep.subr.bf16.mxu0 0
    %240 = vmatpush1.bf16.msra.mxu0 %v223
    %241 = vmatprep.subr.bf16.mxu0 0
    %242 = vmatpush1.bf16.msra.mxu0 %v224
    %243 = vmatprep.subr.bf16.mxu0 0
    %244 = vmatpush1.bf16.msra.mxu0 %v225
    %245 = vmatprep.subr.bf16.mxu0 0
    %246 = vmatpush1.bf16.msra.mxu0 %v226
    %247 = vmatprep.subr.bf16.mxu0 0
    %248 = vmatpush1.bf16.msra.mxu0 %v227
    %249 = vmatprep.subr.bf16.mxu0 0
    %250 = vmatpush1.bf16.msra.mxu0 %v228
    %251 = vmatprep.subr.bf16.mxu0 0
    %252 = vmatpush1.bf16.msra.mxu0 %v229
    %253 = vmatprep.subr.bf16.mxu0 0
    %254 = vmatpush1.bf16.msra.mxu0 %v230
    %255 = vmatprep.subr.bf16.mxu0 0
    %256 = vmatpush1.bf16.msra.mxu0 0
    %257 = vmatprep.subr.bf16.mxu0 0
    %258 = vmatpush1.bf16.msra.mxu0 0
    %259 = vmatprep.subr.bf16.mxu0 0
    %260 = vmatpush1.bf16.msra.mxu0 0
    %261 = vmatprep.subr.bf16.mxu0 0
    %262 = vmatpush1.bf16.msra.mxu0 0
    %263 = vmatprep.subr.bf16.mxu0 0
    %264 = vmatpush1.bf16.msra.mxu0 0
    %265 = vmatprep.subr.bf16.mxu0 0
    %266 = vmatpush1.bf16.msra.mxu0 0
    %267 = vmatprep.subr.bf16.mxu0 0
    %268 = vmatpush1.bf16.msra.mxu0 0
    %269 = vmatprep.subr.bf16.mxu0 0
    %270 = vmatpush1.bf16.msra.mxu0 0
    %271 = vmatprep.mubr.bf16.mxu0 0
    %272 = vmatmul.mubr.bf16.gmra.mrb[0].mxu0 %v167
    %v273 = vpop.f32.mrb[0].mxu0
    %v274 = vadd.f32 %v189, %v273
    %v275 = vpop.f32.mrb[0].mxu0
    %v276 = vpop.f32.mrb[0].mxu0
    %v277 = vpop.f32.mrb[0].mxu0
    %278 = vdwg.mxu0
    %v279 = vmax.f32 %v274, 0.0
    %v280 = vpack.c.bf16 %v279, %v279
    %v281 = vld [vmem:[#allocation7] sm:$0xf]
    %v282 = vld [vmem:[#allocation7 + $0x4] sm:$0xf]
    %v283 = vld [vmem:[#allocation7 + $0x8] sm:$0xf]
    %v284 = vld [vmem:[#allocation7 + $0xc] sm:$0xf]
    %v285 = vld [vmem:[#allocation7 + $0x10] sm:$0xf]
    %v286 = vld [vmem:[#allocation7 + $0x14] sm:$0xf]
    %v287 = vld [vmem:[#allocation7 + $0x18] sm:$0xf]
    %v288 = vld [vmem:[#allocation7 + $0x1c] sm:$0xf]
    %v289 = vld [vmem:[#allocation7 + $0x20] sm:$0xf]
    %v290 = vld [vmem:[#allocation7 + $0x24] sm:$0xf]
    %v291 = vld [vmem:[#allocation7 + $0x28] sm:$0xf]
    %v292 = vld [vmem:[#allocation7 + $0x2c] sm:$0xf]
    %v293 = vld [vmem:[#allocation7 + $0x30] sm:$0xf]
    %v294 = vld [vmem:[#allocation7 + $0x34] sm:$0xf]
    %v295 = vld [vmem:[#allocation7 + $0x38] sm:$0xf]
    %v296 = vld [vmem:[#allocation7 + $0x3c] sm:$0xf]
    %v297 = vld [vmem:[%s6] sm:$0x1]
    %v299 = vlaneseq
    %v300 = vshrl.u32 %v299, 7
    %v301 = vsub.s32 0, %v300
    %v302 = vrot.slane %v297, %v301
    %v320 = vunpack.c.l.b16 %v281
    %v321 = vunpack.c.l.b16 %v282
    %v322 = vunpack.c.l.b16 %v283
    %v323 = vunpack.c.l.b16 %v284
    %v324 = vunpack.c.l.b16 %v285
    %v325 = vunpack.c.l.b16 %v286
    %v326 = vunpack.c.l.b16 %v287
    %v327 = vunpack.c.l.b16 %v288
    %v328 = vunpack.c.l.b16 %v289
    %v329 = vunpack.c.l.b16 %v290
    %v330 = vunpack.c.l.b16 %v291
    %v331 = vunpack.c.l.b16 %v292
    %v332 = vunpack.c.l.b16 %v293
    %v333 = vunpack.c.l.b16 %v294
    %v334 = vunpack.c.l.b16 %v295
    %v335 = vunpack.c.l.b16 %v296
    %v336 = vpack.c.b16 %v321, %v320
    %v337 = vpack.c.b16 %v323, %v322
    %v338 = vpack.c.b16 %v325, %v324
    %v339 = vpack.c.b16 %v327, %v326
    %v340 = vpack.c.b16 %v329, %v328
    %v341 = vpack.c.b16 %v331, %v330
    %v342 = vpack.c.b16 %v333, %v332
    %v343 = vpack.c.b16 %v335, %v334
    %352 = vmatprep.subr.bf16.mxu0 0
    %353 = vmatpush1.bf16.msra.mxu0 %v336
    %354 = vmatprep.subr.bf16.mxu0 0
    %355 = vmatpush1.bf16.msra.mxu0 %v337
    %356 = vmatprep.subr.bf16.mxu0 0
    %357 = vmatpush1.bf16.msra.mxu0 %v338
    %358 = vmatprep.subr.bf16.mxu0 0
    %359 = vmatpush1.bf16.msra.mxu0 %v339
    %360 = vmatprep.subr.bf16.mxu0 0
    %361 = vmatpush1.bf16.msra.mxu0 %v340
    %362 = vmatprep.subr.bf16.mxu0 0
    %363 = vmatpush1.bf16.msra.mxu0 %v341
    %364 = vmatprep.subr.bf16.mxu0 0
    %365 = vmatpush1.bf16.msra.mxu0 %v342
    %366 = vmatprep.subr.bf16.mxu0 0
    %367 = vmatpush1.bf16.msra.mxu0 %v343
    %368 = vmatprep.subr.bf16.mxu0 0
    %369 = vmatpush1.bf16.msra.mxu0 0
    %370 = vmatprep.subr.bf16.mxu0 0
    %371 = vmatpush1.bf16.msra.mxu0 0
    %372 = vmatprep.subr.bf16.mxu0 0
    %373 = vmatpush1.bf16.msra.mxu0 0
    %374 = vmatprep.subr.bf16.mxu0 0
    %375 = vmatpush1.bf16.msra.mxu0 0
    %376 = vmatprep.subr.bf16.mxu0 0
    %377 = vmatpush1.bf16.msra.mxu0 0
    %378 = vmatprep.subr.bf16.mxu0 0
    %379 = vmatpush1.bf16.msra.mxu0 0
    %380 = vmatprep.subr.bf16.mxu0 0
    %381 = vmatpush1.bf16.msra.mxu0 0
    %382 = vmatprep.subr.bf16.mxu0 0
    %383 = vmatpush1.bf16.msra.mxu0 0
    %384 = vmatprep.mubr.bf16.mxu0 0
    %385 = vmatmul.mubr.bf16.gmra.mrb[0].mxu0 %v280
    %v386 = vpop.f32.mrb[0].mxu0
    %v387 = vadd.f32 %v302, %v386
    %v388 = vpop.f32.mrb[0].mxu0
    %v389 = vpop.f32.mrb[0].mxu0
    %v390 = vpop.f32.mrb[0].mxu0
    %391 = vdwg.mxu0
    %vm392 = vcmask 31744
    %393 = vst.msk [vmem:[#allocation8] sm:$0xff] %vm392, %v387
    // Predicated region
    $region42: #{dqn_forward.1} parent=1 // pred_check
      _
    $region43: #{dqn_forward.1} parent=1 // pred_check_branch
      %395 = sbr.rel (0) target = $region45
    $region44: #{dqn_forward.1} parent=1 // pred_region
      %s397 = ssub.s32 128, 32
      %398 = vsyncadd [#allocation4], %s397
      %s399 = sshll.u32 [#allocation8], 4
      %s400 = int_to_ptr.vmem [resolvable:$true] %s399
      %405 = dma.vmem_to_hbm [thread:$0]  %s400, 32, %s7, [#allocation4], 32, 32, 2
    $region45: #{dqn_forward.1} parent=1 // pred_fallthru
      _
    // Predicated region
    $region46: #{dqn_forward.1} parent=1 // pred_check
      _
    $region47: #{dqn_forward.1} parent=1 // pred_check_branch
      %407 = sbr.rel (0) target = $region49
    $region48: #{dqn_forward.1} parent=1 // pred_region
      %408 = dma.done [#allocation4], 128
    $region49: #{dqn_forward.1} parent=1 // pred_fallthru
      _
    %409 = vsyncpa [#allocation3], 1
    %410 = vsyncpa [#allocation6], 1
    %411 = vsyncpa [#allocation4], 1

</llo_original>
